<compile_context>
chip_gen: v5e
topology: v5e:2x2
jax: 0.10.0
libtpu: 0.0.40
codegen_flags: <defaults>
</compile_context>

<pallas_src>
import functools

import jax
import jax.numpy as jnp
import numpy as np
from jax.experimental import pallas as pl
from jax.experimental.pallas import tpu as pltpu


# ------------------------------ activations ---------------------------------
def _hardswish(x):
    # PyTorch Hardswish: x * relu6(x + 3) / 6
    return x * jnp.clip(x + 3.0, 0.0, 6.0) * (1.0 / 6.0)


def _hardsigmoid(x):
    # PyTorch Hardsigmoid: relu6(x + 3) / 6
    return jnp.clip(x + 3.0, 0.0, 6.0) * (1.0 / 6.0)


# ------------------- roll-direction probe (cached, runs once) ----------------
_ROLL_SIGN = None  # +1 => pltpu.roll matches np.roll (out[i] = x[i - shift])


def _detect_roll_sign():
    """Pin down pltpu.roll's rotation convention with a tiny one-off kernel."""
    global _ROLL_SIGN
    if _ROLL_SIGN is not None:
        return _ROLL_SIGN

    def probe(x_ref, o_ref):
        o_ref[...] = pltpu.roll(x_ref[...], 1, axis=1)

    x = jnp.broadcast_to(jnp.arange(128, dtype=jnp.float32)[None, :], (8, 128))
    y = pl.pallas_call(
        probe, out_shape=jax.ShapeDtypeStruct((8, 128), jnp.float32))(x)
    first = float(np.asarray(y)[0, 0])
    # np.roll convention: out[0] = x[-1] = 127 ; opposite: out[0] = x[1] = 1
    _ROLL_SIGN = 1 if first == 127.0 else -1
    return _ROLL_SIGN


# -------------------- host-side constant tables for the DW taps --------------
def _dw_tap_tables(H, W, ksize, nb):
    """Per-tap validity masks over nb*HW lanes and the per-tap roll shifts.

    mask[t, 0, p] = 1 iff output pixel p's source pixel for tap t lies inside
    the image (implicit zero padding).  The mask is tiled nb times so a roll
    across a batch-element boundary in the lane-folded layout is zeroed too.
    """
    HW = H * W
    L = nb * HW
    pad = (ksize - 1) // 2
    sign = _detect_roll_sign()

    p = np.arange(HW)
    hh, ww = p // W, p % W
    masks, shifts = [], []
    for dy in range(-pad, pad + 1):
        for dx in range(-pad, pad + 1):
            valid = ((hh + dy >= 0) & (hh + dy < H) &
                     (ww + dx >= 0) & (ww + dx < W)).astype(np.float32)
            masks.append(np.tile(valid, nb))
            off = dy * W + dx           # want gathered[p] = h[p + off]
            shifts.append(int((-sign * off) % L))
    mask = jnp.asarray(np.stack(masks, 0).reshape(ksize * ksize, 1, L))
    return mask, tuple(shifts)


# ------------------------------ fused kernel ---------------------------------
def _mbconv_kernel(x_ref, mask_ref,
                   w_exp_ref, b1_ref,
                   w_dw_ref, b2_ref,
                   w_se1_ref, w_se2_ref,
                   w_proj_ref, b3_ref,
                   o_ref, *,
                   HW, nb, shifts, use_expand, use_se, use_res):
    """One batch block (nb elements) per grid step. Activations are (C, nb*HW)."""
    x = x_ref[...]                                            # (Cin, nb*HW)

    # ---- 1) 1x1 expand conv (BN1 scale pre-folded into the weight) + Hardswish.
    if use_expand:
        h = jnp.dot(w_exp_ref[...], x, preferred_element_type=jnp.float32)
        h = _hardswish(h + b1_ref[...])                       # (Cexp, nb*HW)
    else:
        h = x

    # ---- 2) KxK depthwise conv (BN2 scale pre-folded into taps) + Hardswish.
    # One XLU lane-roll per tap; zero padding / batch-boundary isolation comes
    # from the host-precomputed {0,1} mask.
    acc = jnp.zeros(h.shape, jnp.float32)
    for t, s in enumerate(shifts):
        w_t = w_dw_ref[t]                                     # (Cexp, 1)
        if s == 0:                                            # center tap
            acc = acc + h * w_t
        else:
            acc = acc + (pltpu.roll(h, s, axis=1) * mask_ref[t]) * w_t
    y = _hardswish(acc + b2_ref[...])                         # (Cexp, nb*HW)

    # ---- 3) Squeeze-and-Excitation, per batch element, entirely on-chip.
    if use_se:
        if nb == 1:
            pooled = jnp.sum(y, axis=1, keepdims=True) * (1.0 / HW)            # (Cexp,1)
            z = jnp.maximum(
                jnp.sum(w_se1_ref[...] * pooled, axis=0, keepdims=True), 0.0)  # (1,Cred)
            se = _hardsigmoid(
                jnp.sum(w_se2_ref[...] * z, axis=1, keepdims=True))            # (Cexp,1)
            y = y * se
        else:
            scaled = []
            for b in range(nb):                               # 128-aligned lane slices
                y_b = y[:, b * HW:(b + 1) * HW]
                pooled = jnp.sum(y_b, axis=1, keepdims=True) * (1.0 / HW)
                z = jnp.maximum(
                    jnp.sum(w_se1_ref[...] * pooled, axis=0, keepdims=True), 0.0)
                se = _hardsigmoid(
                    jnp.sum(w_se2_ref[...] * z, axis=1, keepdims=True))
                scaled.append(y_b * se)
            y = jnp.concatenate(scaled, axis=1)

    # ---- 4) 1x1 project conv (BN3 scale pre-folded) + bias (+ residual).
    out = jnp.dot(w_proj_ref[...], y, preferred_element_type=jnp.float32)
    out = out + b3_ref[...]                                   # (Cout, nb*HW)
    if use_res:
        out = out + x
    o_ref[...] = out.astype(o_ref.dtype)


# ------------------------------- parameters ----------------------------------
def _fold_bn(gamma, beta, mean, var, eps=1e-5):
    scale = gamma / jnp.sqrt(var + eps)
    bias = beta - mean * scale
    return scale.reshape(-1, 1), bias.reshape(-1, 1)          # (C, 1) columns


def init_params(key, cin, cout, cexp, ksize, se_ratio):
    ks = jax.random.split(key, 20)

    def bn(k0, k1, k2, k3, c):
        gamma = 1.0 + 0.1 * jax.random.normal(ks[k0], (c,), jnp.float32)
        beta = 0.1 * jax.random.normal(ks[k1], (c,), jnp.float32)
        mean = 0.1 * jax.random.normal(ks[k2], (c,), jnp.float32)
        var = jax.random.uniform(ks[k3], (c,), jnp.float32, minval=0.5, maxval=1.5)
        return _fold_bn(gamma, beta, mean, var)

    # Matches the PyTorch module exactly:
    #   se_channels = max(1, int(in_channels * se_ratio))
    #   SEModule(exp_channels, reduction=exp_channels // se_channels)
    #   reduced = max(1, exp_channels // reduction)
    se_channels = max(1, int(cin * se_ratio))
    reduction = cexp // se_channels
    cred = max(1, cexp // reduction)

    params = {
        # conv weights in kernel-friendly channel-major layouts
        "w_expand": 0.2 * jax.random.normal(ks[0], (cexp, cin), jnp.float32),
        "w_dw": 0.2 * jax.random.normal(ks[1], (ksize * ksize, cexp, 1), jnp.float32),
        "w_project": 0.2 * jax.random.normal(ks[2], (cout, cexp), jnp.float32),
        # SE Linear weights (bias=False), both stored as (Cexp, Cred):
        #   w_se1 = fc1.weight.T (Linear Cexp->Cred), w_se2 = fc2.weight (Linear Cred->Cexp)
        "w_se1": 0.2 * jax.random.normal(ks[3], (cexp, cred), jnp.float32),
        "w_se2": 0.2 * jax.random.normal(ks[4], (cexp, cred), jnp.float32),
    }
    params["bn1_scale"], params["bn1_bias"] = bn(5, 6, 7, 8, cexp)
    params["bn2_scale"], params["bn2_bias"] = bn(9, 10, 11, 12, cexp)
    params["bn3_scale"], params["bn3_bias"] = bn(13, 14, 15, 16, cout)
    return params


# ------------------------------ forward pass ---------------------------------
def inverted_residual_forward(x_nchw, params, *, ksize, stride, expand_ratio, se_ratio):
    if stride != 1:
        # TODO(synk): stride > 1 depthwise (spatial downsampling) not implemented.
        raise NotImplementedError("InvertedResidual Pallas kernel supports stride=1 only")

    N, Cin, H, W = x_nchw.shape
    HW = H * W
    Cexp = params["w_expand"].shape[0]
    Cout = params["w_project"].shape[0]
    use_expand = expand_ratio != 1
    use_se = bool(se_ratio)
    use_res = (stride == 1) and (Cin == Cout)

    # Batch blocking: keep exactly 2 grid steps when N is even (so both v7x
    # TensorCores get work); otherwise one fat step.  Per-step footprint is
    # tens of KiB, so VMEM limits are never a concern.
    num_steps = 2 if (N >= 2 and N % 2 == 0) else 1
    nb = N // num_steps
    L = nb * HW

    # Fold eval-mode BN scales into the conv weights (O(weights) host/XLA ops).
    w_exp = params["w_expand"] * params["bn1_scale"]                # (Cexp, Cin)
    w_dw = params["w_dw"] * params["bn2_scale"][None, :, :]         # (K*K, Cexp, 1)
    w_prj = params["w_project"] * params["bn3_scale"]               # (Cout, Cexp)

    # NCHW -> channel-major (C, N*HW): lane-dense layout; the N<->C transpose is
    # a few KiB and happens once in XLA outside the kernel.
    x_cm = x_nchw.reshape(N, Cin, HW).transpose(1, 0, 2).reshape(Cin, N * HW)

    masks, shifts = _dw_tap_tables(H, W, ksize, nb)  # trace-time constants

    kernel = functools.partial(
        _mbconv_kernel, HW=HW, nb=nb, shifts=shifts,
        use_expand=use_expand, use_se=use_se, use_res=use_res)

    def _const_spec(a):
        return pl.BlockSpec(a.shape, lambda n, _nd=a.ndim: (0,) * _nd)

    args = (x_cm, masks,
            w_exp, params["bn1_bias"],
            w_dw, params["bn2_bias"],
            params["w_se1"], params["w_se2"],
            w_prj, params["bn3_bias"])

    in_specs = [pl.BlockSpec((Cin, L), lambda n: (0, n))]
    in_specs += [_const_spec(a) for a in args[1:]]

    out_cm = pl.pallas_call(
        kernel,
        out_shape=jax.ShapeDtypeStruct((Cout, N * HW), jnp.float32),
        grid=(num_steps,),
        in_specs=in_specs,
        out_specs=pl.BlockSpec((Cout, L), lambda n: (0, n)),
        compiler_params=pltpu.CompilerParams(
            dimension_semantics=("parallel",)),
    )(*args)

    # back to NCHW
    return out_cm.reshape(Cout, N, HW).transpose(1, 0, 2).reshape(N, Cout, H, W)


# ---------------------------------- main --------------------------------------
if __name__ == "__main__":
    # Module config: InvertedResidual(in=4, out=4, kernel_size=3, stride=1,
    #                                 expand_ratio=4, se_ratio=0.25, Hardswish)
    N, Cin, H, W = 2, 4, 16, 16
    Cout = 4
    ksize = 3
    stride = 1
    expand_ratio = 4
    se_ratio = 0.25
    Cexp = int(Cin * expand_ratio)

    key = jax.random.PRNGKey(0)
    kx, kp = jax.random.split(key)
    x = jax.random.normal(kx, (N, Cin, H, W), jnp.float32)  # PyTorch NCHW input
    params = init_params(kp, Cin, Cout, Cexp, ksize, se_ratio)

    _detect_roll_sign()  # warm the cached roll-direction probe outside jit

    fwd = jax.jit(functools.partial(
        inverted_residual_forward, ksize=ksize, stride=stride,
        expand_ratio=expand_ratio, se_ratio=se_ratio))
    out = fwd(x, params)
    jax.block_until_ready(out)
    assert out.shape == (N, Cout, H, W), out.shape
    print("KERNEL_OK")
</pallas_src>

<mosaic_0001>
module attributes {stable_mosaic.version = 11 : i64} {
  func.func @probe(%arg0: memref<8x128xf32, #tpu.memory_space<vmem>>, %arg1: memref<8x128xf32, #tpu.memory_space<vmem>>) attributes {dimension_semantics = [], scalar_prefetch = 0 : i64, scratch_operands = 0 : i64, tpu.core_type = #tpu.core_type<tc>} {
    %c0 = arith.constant 0 : index
    %c0_0 = arith.constant 0 : index
    %0 = vector.load %arg0[%c0, %c0_0] : memref<8x128xf32, #tpu.memory_space<vmem>>, vector<8x128xf32>
    %c1_i32 = arith.constant 1 : i32
    %1 = tpu.dynamic_rotate %0 by %c1_i32 dim 1 : vector<8x128xf32>, i32 -> vector<8x128xf32>
    %c0_1 = arith.constant 0 : index
    %c0_2 = arith.constant 0 : index
    %2 = vector.load %arg1[%c0_1, %c0_2] : memref<8x128xf32, #tpu.memory_space<vmem>>, vector<8x128xf32>
    tpu.vector_store %arg1[%c0_1, %c0_2], %1 {strides = array<i32>} : memref<8x128xf32, #tpu.memory_space<vmem>>, vector<8x128xf32>,
    return
  }
}

</mosaic_0001>

<llo_original>
// kernel: tpu_custom_call.1
$region0: #{tpu_custom_call.1}
  #allocation0 [shape = 'u32[]', space=smem, size = 0x4, offset = 0x4, fixed_abs, tag = 'smem constant byte address 0x4 - core index']
  #allocation1 [shape = 'u32[72,128]{1,0:T(1,128)}', space=vmem, size = 0x9000, scoped, tag = 'internal scratch']
  %s0 = inlined_call_operand.hbm [shape: f32[8,128], index: 0, kind: input, shape index: {}]
  %s1 = inlined_call_operand.hbm [shape: f32[8,128], index: 1, kind: output, shape index: {}]
  %s2 = sld [smem:[#allocation0]]
  $region18: #{tpu_custom_call.1} parent=0
    _
  %s4 = ssub.s32 1, %s2
  %s5 = scalar_select 0, %s4, %s2
  $region1: #{tpu_custom_call.1} parent=0
    #allocation2 [shape = 'u8[4096]{0}', space=vmem, size = 0x1000, scoped, tag = 'input window, operand 0, single buffered']
    #allocation3 [shape = 's32[1]{0}', space=sflag, size = 0x4, scoped, tag = 'scoped memory for tpu_custom_call.1']
    #allocation4 [shape = 's32[1]{0}', space=sflag, size = 0x4, scoped, tag = 'scoped memory for tpu_custom_call.1']
    #allocation5 [shape = 'u8[4096]{0}', space=vmem, size = 0x1000, scoped, tag = 'output window, operand 0, single buffered']
    %6 = vsyncpa [#allocation3], 0
    %7 = vsyncpa [#allocation4], 0
    // Predicated region
    $region2: #{tpu_custom_call.1} parent=1 // pred_check
      _
    $region3: #{tpu_custom_call.1} parent=1 // pred_check_branch
      %9 = sbr.rel (0) target = $region5
    $region4: #{tpu_custom_call.1} parent=1 // pred_region
      %11 = vsyncadd [#allocation3], 0
      %s13 = sshll.u32 %s0, 4
      %s14 = int_to_ptr.hbm [resolvable:$true] %s13
      %s15 = sshll.u32 [#allocation2], 4
      %s16 = int_to_ptr.vmem [resolvable:$true] %s15
      %18 = dma.hbm_to_vmem [thread:$0]  %s14, 128, %s16, [#allocation3]
    $region5: #{tpu_custom_call.1} parent=1 // pred_fallthru
      _
    // Predicated region
    $region6: #{tpu_custom_call.1} parent=1 // pred_check
      _
    $region7: #{tpu_custom_call.1} parent=1 // pred_check_branch
      %20 = sbr.rel (0) target = $region9
    $region8: #{tpu_custom_call.1} parent=1 // pred_region
      %22 = dma.done [#allocation3], 128
    $region9: #{tpu_custom_call.1} parent=1 // pred_fallthru
      _
    %v23 = vld [vmem:[#allocation2] sm:$0xff]
    %24 = vrot.lane.b32.xlu0 %v23, 1
    %v25 = vpop.permute.xlu0 %24
    %26 = vst [vmem:[#allocation5] sm:$0xff] %v25
    // Predicated region
    $region10: #{tpu_custom_call.1} parent=1 // pred_check
      _
    $region11: #{tpu_custom_call.1} parent=1 // pred_check_branch
      %28 = sbr.rel (0) target = $region13
    $region12: #{tpu_custom_call.1} parent=1 // pred_region
      %30 = vsyncadd [#allocation4], 0
      %s32 = sshll.u32 [#allocation5], 4
      %s33 = int_to_ptr.vmem [resolvable:$true] %s32
      %s34 = sshll.u32 %s1, 4
      %s35 = int_to_ptr.hbm [resolvable:$true] %s34
      %37 = dma.vmem_to_hbm [thread:$0]  %s33, 128, %s35, [#allocation4]
    $region13: #{tpu_custom_call.1} parent=1 // pred_fallthru
      _
    // Predicated region
    $region14: #{tpu_custom_call.1} parent=1 // pred_check
      _
    $region15: #{tpu_custom_call.1} parent=1 // pred_check_branch
      %39 = sbr.rel (0) target = $region17
    $region16: #{tpu_custom_call.1} parent=1 // pred_region
      %41 = dma.done [#allocation4], 128
    $region17: #{tpu_custom_call.1} parent=1 // pred_fallthru
      _
    %42 = vsyncpa [#allocation3], 1
    %43 = vsyncpa [#allocation4], 1

</llo_original>
